<compile_context>
chip_gen: v5e
topology: v5e:2x2
jax: 0.10.0
libtpu: 0.0.40
codegen_flags: <defaults>
</compile_context>

<pallas_src>
import functools
import math

import jax
import jax.numpy as jnp
import numpy as np
from jax.experimental import pallas as pl
from jax.experimental.pallas import tpu as pltpu


DEFAULT_MASK_VALUE = -0.7 * float(np.finfo(np.float32).max)
LOG2E = 1.4426950408889634


def _flash_fwd_kernel(q_ref, k_ref, v_ref, o_ref, m_sc, l_sc, acc_sc, *,
                      scale, causal, block_q, block_k, seqlen_q, seqlen_k):
    """One (batch, head, q-tile) slab; grid axis 3 walks K/V tiles.

    q_ref: (tq, D)   k_ref/v_ref: (tk, D)   o_ref: (tq, D)
    m_sc/l_sc: (tq, 1) f32 scratch          acc_sc: (tq, D) f32 scratch
    """
    qt = pl.program_id(2)
    kt = pl.program_id(3)

    @pl.when(kt == 0)
    def _init():
        m_sc[...] = jnp.full(m_sc.shape, -jnp.inf, dtype=m_sc.dtype)
        l_sc[...] = jnp.zeros(l_sc.shape, dtype=l_sc.dtype)
        acc_sc[...] = jnp.zeros(acc_sc.shape, dtype=acc_sc.dtype)

    def _compute(apply_mask):
        # scale * log2(e) folded into Q: one lane-dense (tq, D) multiply; the
        # exponentials below become exp2 (no per-element log2e multiply).
        q = q_ref[...] * (scale * LOG2E)        # native dtype (bf16 stays)
        k = k_ref[...]
        v = v_ref[...]

        # scores (tq, tk): native-dtype MXU matmul, f32 accumulation.
        s = jax.lax.dot_general(q, k, (((1,), (1,)), ((), ())),
                                preferred_element_type=jnp.float32)

        if apply_mask:
            # flash-attn v2 causal: bottom-right aligned when T != S.
            offset = seqlen_k - seqlen_q
            row = jax.lax.broadcasted_iota(jnp.int32, (block_q, block_k), 0) \
                + qt * block_q
            col = jax.lax.broadcasted_iota(jnp.int32, (block_q, block_k), 1) \
                + kt * block_k
            # Large finite value (not -inf) so masked rows never become NaN.
            s = jnp.where(col <= row + offset, s, DEFAULT_MASK_VALUE)

        m_prev = m_sc[...]                                   # (tq, 1)
        m_new = jnp.maximum(m_prev, s.max(axis=-1, keepdims=True))
        alpha = jnp.exp2(m_prev - m_new)
        p = jnp.exp2(s - m_new)                              # (tq, tk) f32

        l_sc[...] = alpha * l_sc[...] + p.sum(axis=-1, keepdims=True)
        pv = jax.lax.dot_general(p.astype(v.dtype), v,
                                 (((1,), (0,)), ((), ())),
                                 preferred_element_type=jnp.float32)
        acc_sc[...] = alpha * acc_sc[...] + pv
        m_sc[...] = m_new

    if causal:
        offset = seqlen_k - seqlen_q
        row_lo = qt * block_q
        col_lo = kt * block_k
        # Tile has at least one valid (col <= row + offset) entry:
        has_valid = col_lo <= row_lo + (block_q - 1) + offset
        # Tile is entirely at/below the diagonal -> no masking needed:
        fully_valid = col_lo + (block_k - 1) <= row_lo + offset
        pl.when(jnp.logical_and(has_valid, jnp.logical_not(fully_valid)))(
            lambda: _compute(True))
        pl.when(fully_valid)(lambda: _compute(False))
    else:
        _compute(False)

    @pl.when(kt == pl.num_programs(3) - 1)
    def _finalize():
        l = l_sc[...]
        # Rows that never saw a valid key (possible when causal and T > S)
        # have l == 0 / acc == 0 -> emit 0 instead of NaN.
        inv_l = pl.reciprocal(jnp.where(l == 0.0, 1.0, l), approx=True)
        o_ref[...] = (acc_sc[...] * inv_l).astype(o_ref.dtype)


def flash_attention(q, kv, softmax_scale=None, causal=False,
                    key_padding_mask=None, block_q=256, block_k=256):
    """Pallas equivalent of FlashAttention.forward (key_padding_mask=None).

    q:  (B, T, H, D)
    kv: (B, S, 2, H, D)   with kv[:, :, 0] = K and kv[:, :, 1] = V
    returns: (output (B, T, H, D), None)
    """
    assert key_padding_mask is None, "key_padding_mask path not implemented"
    B, T, H, D = q.shape
    Bk, S, two, Hk, Dk = kv.shape
    assert B == Bk and two == 2 and H == Hk and D == Dk

    scale = float(softmax_scale) if softmax_scale is not None \
        else 1.0 / math.sqrt(D)

    # One layout pass in the wrapper buys clean (tile, D) per-head blocks in
    # the kernel (no sub-128-lane per-head slicing / relayouts per K step).
    qh = jnp.transpose(q, (0, 2, 1, 3))              # (B, H, T, D)
    kh = jnp.transpose(kv[:, :, 0], (0, 2, 1, 3))    # (B, H, S, D)
    vh = jnp.transpose(kv[:, :, 1], (0, 2, 1, 3))    # (B, H, S, D)

    tq = min(block_q, T)
    tk = min(block_k, S)
    assert T % tq == 0, "T must be divisible by the Q tile size"
    assert S % tk == 0, "S must be divisible by the K tile size"

    grid = (B, H, T // tq, S // tk)
    offset = S - T

    def q_index_map(b, h, qt, kt):
        return (b, h, qt, 0)

    if causal:
        def kv_index_map(b, h, qt, kt):
            # Clamp to the last K tile intersecting the causal band for this
            # q-tile: past the diagonal the block index stops changing, so
            # Pallas keeps the tile resident and issues no further DMA.
            last_valid = jnp.maximum((qt * tq + tq - 1 + offset) // tk, 0)
            return (b, h, jnp.minimum(kt, last_valid), 0)
    else:
        def kv_index_map(b, h, qt, kt):
            return (b, h, kt, 0)

    kernel = functools.partial(
        _flash_fwd_kernel, scale=scale, causal=causal,
        block_q=tq, block_k=tk, seqlen_q=T, seqlen_k=S)

    # Explicit VMEM budget (double-buffered tiles + f32 state, lane padding
    # included) with headroom -- keeps the same tiling safe on v7x (64 MiB).
    lane = lambda n: ((n + 127) // 128) * 128
    itemsize = q.dtype.itemsize
    est = (2 * tq * lane(D) * itemsize            # q double-buffer
           + 2 * 2 * tk * lane(D) * itemsize      # k + v double-buffers
           + 2 * tq * lane(D) * itemsize          # out double-buffer
           + tq * lane(D) * 4                     # f32 acc scratch
           + 2 * tq * 128 * 4)                    # m/l scratch (lane-padded)
    vmem_limit = int(min(96 * 2**20, max(32 * 2**20, 2 * est)))

    out = pl.pallas_call(
        kernel,
        out_shape=jax.ShapeDtypeStruct((B, H, T, D), q.dtype),
        grid_spec=pltpu.PrefetchScalarGridSpec(
            num_scalar_prefetch=0,
            grid=grid,
            in_specs=[
                pl.BlockSpec((None, None, tq, D), q_index_map),    # q
                pl.BlockSpec((None, None, tk, D), kv_index_map),   # k
                pl.BlockSpec((None, None, tk, D), kv_index_map),   # v
            ],
            out_specs=pl.BlockSpec((None, None, tq, D), q_index_map),
            scratch_shapes=[
                pltpu.VMEM((tq, 1), jnp.float32),   # running max m
                pltpu.VMEM((tq, 1), jnp.float32),   # running denom l
                pltpu.VMEM((tq, D), jnp.float32),   # accumulator
            ],
        ),
        compiler_params=pltpu.CompilerParams(
            dimension_semantics=("parallel", "parallel", "parallel",
                                 "arbitrary"),
            vmem_limit_bytes=vmem_limit),
    )(qh, kh, vh)

    return jnp.transpose(out, (0, 2, 1, 3)), None


def _reference_attention(q, kv, softmax_scale=None, causal=False):
    B, T, H, D = q.shape
    S = kv.shape[1]
    scale = softmax_scale if softmax_scale is not None else 1.0 / math.sqrt(D)
    k = kv[:, :, 0]
    v = kv[:, :, 1]
    s = jnp.einsum('bthd,bshd->bhts', q.astype(jnp.float32),
                   k.astype(jnp.float32)) * scale
    if causal:
        # bottom-right aligned (flash-attn v2 semantics when T != S)
        mask = jnp.arange(S)[None, :] <= (jnp.arange(T)[:, None] + (S - T))
        s = jnp.where(mask[None, None], s, -jnp.inf)
    p = jax.nn.softmax(s, axis=-1)
    o = jnp.einsum('bhts,bshd->bthd', p, v.astype(jnp.float32))
    return o.astype(q.dtype)


if __name__ == "__main__":
    key = jax.random.PRNGKey(0)
    kq, kkv, kq2 = jax.random.split(key, 3)

    B, T, S, H, D = 2, 16, 32, 2, 32          # small, shape-consistent sizes
    q = jax.random.normal(kq, (B, T, H, D), dtype=jnp.float32)
    kv = jax.random.normal(kkv, (B, S, 2, H, D), dtype=jnp.float32)

    # 1) default tiles, non-causal
    out, _ = flash_attention(q, kv)
    out = jax.block_until_ready(out)
    ref = _reference_attention(q, kv)
    np.testing.assert_allclose(np.asarray(out), np.asarray(ref),
                               rtol=2e-3, atol=2e-3)

    # 2) causal (T != S, bottom-right aligned), small tiles: exercises the
    #    multi-tile online softmax, the fully-valid fast path and the
    #    diagonal-straddling masked path.
    out_c, _ = flash_attention(q, kv, causal=True, block_q=8, block_k=16)
    out_c = jax.block_until_ready(out_c)
    ref_c = _reference_attention(q, kv, causal=True)
    np.testing.assert_allclose(np.asarray(out_c), np.asarray(ref_c),
                               rtol=2e-3, atol=2e-3)

    # 3) causal with T == S: exercises the K/V index_map clamp (tiles above
    #    the diagonal are neither fetched nor computed).
    q2 = jax.random.normal(kq2, (B, S, H, D), dtype=jnp.float32)
    out_d, _ = flash_attention(q2, kv, causal=True, block_q=8, block_k=8)
    out_d = jax.block_until_ready(out_d)
    ref_d = _reference_attention(q2, kv, causal=True)
    np.testing.assert_allclose(np.asarray(out_d), np.asarray(ref_d),
                               rtol=2e-3, atol=2e-3)

    # 4) bf16 inputs stay bf16 into the MXU
    qb = q.astype(jnp.bfloat16)
    kvb = kv.astype(jnp.bfloat16)
    out_b, _ = flash_attention(qb, kvb)
    out_b = jax.block_until_ready(out_b)
    ref_b = _reference_attention(qb, kvb)
    np.testing.assert_allclose(np.asarray(out_b, dtype=np.float32),
                               np.asarray(ref_b, dtype=np.float32),
                               rtol=5e-2, atol=5e-2)

    print("KERNEL_OK")
</pallas_src>

<mosaic_0001>
module attributes {stable_mosaic.version = 11 : i64} {
  func.func @_flash_fwd_kernel(%arg0: i32, %arg1: i32, %arg2: i32, %arg3: i32, %arg4: memref<1x1x16x32xf32, #tpu.memory_space<vmem>>, %arg5: memref<1x1x32x32xf32, #tpu.memory_space<vmem>>, %arg6: memref<1x1x32x32xf32, #tpu.memory_space<vmem>>, %arg7: memref<1x1x16x32xf32, #tpu.memory_space<vmem>>, %arg8: memref<16x1xf32, #tpu.memory_space<vmem>>, %arg9: memref<16x1xf32, #tpu.memory_space<vmem>>, %arg10: memref<16x32xf32, #tpu.memory_space<vmem>>) attributes {dimension_semantics = [#tpu.dimension_semantics<parallel>, #tpu.dimension_semantics<parallel>, #tpu.dimension_semantics<parallel>, #tpu.dimension_semantics<arbitrary>], iteration_bounds = array<i64: 2, 2, 1, 1>, scalar_prefetch = 0 : i64, scratch_operands = 3 : i64, tpu.core_type = #tpu.core_type<tc>, window_params = [{transform_indices = @transform_0, window_bounds = array<i64: 1, 1, 16, 32>}, {transform_indices = @transform_1, window_bounds = array<i64: 1, 1, 32, 32>}, {transform_indices = @transform_2, window_bounds = array<i64: 1, 1, 32, 32>}, {transform_indices = @transform_3, window_bounds = array<i64: 1, 1, 16, 32>}]} {
    %c0_i32 = arith.constant 0 : i32
    %0 = arith.cmpi eq, %arg3, %c0_i32 : i32
    %1 = arith.extui %0 : i1 to i32
    %c0_i32_0 = arith.constant 0 : i32
    %2 = arith.cmpi ne, %1, %c0_i32_0 : i32
    scf.if %2 {
      %cst_30 = arith.constant 0xFF800000 : f32
      %37 = vector.broadcast %cst_30 : f32 to vector<16x1xf32>
      %c0_31 = arith.constant 0 : index
      %c0_32 = arith.constant 0 : index
      %38 = vector.load %arg8[%c0_31, %c0_32] : memref<16x1xf32, #tpu.memory_space<vmem>>, vector<16x1xf32>
      tpu.vector_store %arg8[%c0_31, %c0_32], %37 {strides = array<i32>} : memref<16x1xf32, #tpu.memory_space<vmem>>, vector<16x1xf32>,
      %cst_33 = arith.constant 0.000000e+00 : f32
      %39 = vector.broadcast %cst_33 : f32 to vector<16x1xf32>
      %c0_34 = arith.constant 0 : index
      %c0_35 = arith.constant 0 : index
      %40 = vector.load %arg9[%c0_34, %c0_35] : memref<16x1xf32, #tpu.memory_space<vmem>>, vector<16x1xf32>
      tpu.vector_store %arg9[%c0_34, %c0_35], %39 {strides = array<i32>} : memref<16x1xf32, #tpu.memory_space<vmem>>, vector<16x1xf32>,
      %cst_36 = arith.constant 0.000000e+00 : f32
      %41 = vector.broadcast %cst_36 : f32 to vector<16x32xf32>
      %c0_37 = arith.constant 0 : index
      %c0_38 = arith.constant 0 : index
      %42 = vector.load %arg10[%c0_37, %c0_38] : memref<16x32xf32, #tpu.memory_space<vmem>>, vector<16x32xf32>
      tpu.vector_store %arg10[%c0_37, %c0_38], %41 {strides = array<i32>} : memref<16x32xf32, #tpu.memory_space<vmem>>, vector<16x32xf32>,
    } else {
    }
    %c0 = arith.constant 0 : index
    %c0_1 = arith.constant 0 : index
    %c0_2 = arith.constant 0 : index
    %c0_3 = arith.constant 0 : index
    %3 = vector.load %arg4[%c0, %c0_1, %c0_2, %c0_3] : memref<1x1x16x32xf32, #tpu.memory_space<vmem>>, vector<1x1x16x32xf32>
    %4 = vector.shape_cast %3 : vector<1x1x16x32xf32> to vector<16x32xf32>
    %cst = arith.constant 0.255034864 : f32
    %5 = vector.broadcast %cst : f32 to vector<16x32xf32>
    %6 = arith.mulf %4, %5 : vector<16x32xf32>
    %c0_4 = arith.constant 0 : index
    %c0_5 = arith.constant 0 : index
    %c0_6 = arith.constant 0 : index
    %c0_7 = arith.constant 0 : index
    %7 = vector.load %arg5[%c0_4, %c0_5, %c0_6, %c0_7] : memref<1x1x32x32xf32, #tpu.memory_space<vmem>>, vector<1x1x32x32xf32>
    %8 = vector.shape_cast %7 : vector<1x1x32x32xf32> to vector<32x32xf32>
    %c0_8 = arith.constant 0 : index
    %c0_9 = arith.constant 0 : index
    %c0_10 = arith.constant 0 : index
    %c0_11 = arith.constant 0 : index
    %9 = vector.load %arg6[%c0_8, %c0_9, %c0_10, %c0_11] : memref<1x1x32x32xf32, #tpu.memory_space<vmem>>, vector<1x1x32x32xf32>
    %10 = vector.shape_cast %9 : vector<1x1x32x32xf32> to vector<32x32xf32>
    %cst_12 = arith.constant dense<0.000000e+00> : vector<16x32xf32>
    %11 = tpu.matmul %6, %8, %cst_12 {dimension_numbers = #tpu.dot_dimension_numbers<[1], [1], [0], [0], [0, 0, 1, 0], [], []>} : vector<16x32xf32>, vector<32x32xf32>, vector<16x32xf32> -> vector<16x32xf32>
    %c0_13 = arith.constant 0 : index
    %c0_14 = arith.constant 0 : index
    %12 = vector.load %arg8[%c0_13, %c0_14] : memref<16x1xf32, #tpu.memory_space<vmem>>, vector<16x1xf32>
    %cst_15 = arith.constant dense<0xFF800000> : vector<16xf32>
    %13 = vector.multi_reduction <maximumf>, %11, %cst_15 [1] : vector<16x32xf32> to vector<16xf32>
    %14 = vector.shape_cast %13 : vector<16xf32> to vector<16x1xf32>
    %15 = arith.maximumf %12, %14 : vector<16x1xf32>
    %16 = arith.subf %12, %15 : vector<16x1xf32>
    %17 = math.exp2 %16 : vector<16x1xf32>
    %18 = vector.broadcast %15 : vector<16x1xf32> to vector<16x32xf32>
    %19 = arith.subf %11, %18 : vector<16x32xf32>
    %20 = math.exp2 %19 : vector<16x32xf32>
    %c0_16 = arith.constant 0 : index
    %c0_17 = arith.constant 0 : index
    %21 = vector.load %arg9[%c0_16, %c0_17] : memref<16x1xf32, #tpu.memory_space<vmem>>, vector<16x1xf32>
    %22 = arith.mulf %17, %21 : vector<16x1xf32>
    %cst_18 = arith.constant dense<0.000000e+00> : vector<16xf32>
    %23 = vector.multi_reduction <add>, %20, %cst_18 [1] : vector<16x32xf32> to vector<16xf32>
    %24 = vector.shape_cast %23 : vector<16xf32> to vector<16x1xf32>
    %25 = arith.addf %22, %24 : vector<16x1xf32>
    %c0_19 = arith.constant 0 : index
    %c0_20 = arith.constant 0 : index
    %26 = vector.load %arg9[%c0_19, %c0_20] : memref<16x1xf32, #tpu.memory_space<vmem>>, vector<16x1xf32>
    tpu.vector_store %arg9[%c0_19, %c0_20], %25 {strides = array<i32>} : memref<16x1xf32, #tpu.memory_space<vmem>>, vector<16x1xf32>,
    %cst_21 = arith.constant dense<0.000000e+00> : vector<16x32xf32>
    %27 = tpu.matmul %20, %10, %cst_21 {dimension_numbers = #tpu.dot_dimension_numbers<[1], [0], [0], [1], [0, 0, 1, 1], [], []>} : vector<16x32xf32>, vector<32x32xf32>, vector<16x32xf32> -> vector<16x32xf32>
    %c0_22 = arith.constant 0 : index
    %c0_23 = arith.constant 0 : index
    %28 = vector.load %arg10[%c0_22, %c0_23] : memref<16x32xf32, #tpu.memory_space<vmem>>, vector<16x32xf32>
    %29 = vector.broadcast %17 : vector<16x1xf32> to vector<16x32xf32>
    %30 = arith.mulf %29, %28 : vector<16x32xf32>
    %31 = arith.addf %30, %27 : vector<16x32xf32>
    %c0_24 = arith.constant 0 : index
    %c0_25 = arith.constant 0 : index
    %32 = vector.load %arg10[%c0_24, %c0_25] : memref<16x32xf32, #tpu.memory_space<vmem>>, vector<16x32xf32>
    tpu.vector_store %arg10[%c0_24, %c0_25], %31 {strides = array<i32>} : memref<16x32xf32, #tpu.memory_space<vmem>>, vector<16x32xf32>,
    %c0_26 = arith.constant 0 : index
    %c0_27 = arith.constant 0 : index
    %33 = vector.load %arg8[%c0_26, %c0_27] : memref<16x1xf32, #tpu.memory_space<vmem>>, vector<16x1xf32>
    tpu.vector_store %arg8[%c0_26, %c0_27], %15 {strides = array<i32>} : memref<16x1xf32, #tpu.memory_space<vmem>>, vector<16x1xf32>,
    %c0_i32_28 = arith.constant 0 : i32
    %34 = arith.cmpi eq, %arg3, %c0_i32_28 : i32
    %35 = arith.extui %34 : i1 to i32
    %c0_i32_29 = arith.constant 0 : i32
    %36 = arith.cmpi ne, %35, %c0_i32_29 : i32
    scf.if %36 {
      %c0_30 = arith.constant 0 : index
      %c0_31 = arith.constant 0 : index
      %37 = vector.load %arg9[%c0_30, %c0_31] : memref<16x1xf32, #tpu.memory_space<vmem>>, vector<16x1xf32>
      %cst_32 = arith.constant 0.000000e+00 : f32
      %38 = vector.broadcast %cst_32 : f32 to vector<16x1xf32>
      %39 = arith.cmpf oeq, %37, %38 : vector<16x1xf32>
      %cst_33 = arith.constant 1.000000e+00 : f32
      %40 = vector.broadcast %cst_33 : f32 to vector<16x1xf32>
      %41 = arith.select %39, %40, %37 : vector<16x1xi1>, vector<16x1xf32>
      %42 = tpu.reciprocal %41 {approx = true} : vector<16x1xf32> -> vector<16x1xf32>
      %c0_34 = arith.constant 0 : index
      %c0_35 = arith.constant 0 : index
      %43 = vector.load %arg10[%c0_34, %c0_35] : memref<16x32xf32, #tpu.memory_space<vmem>>, vector<16x32xf32>
      %44 = vector.broadcast %42 : vector<16x1xf32> to vector<16x32xf32>
      %45 = arith.mulf %43, %44 : vector<16x32xf32>
      %c0_36 = arith.constant 0 : index
      %c0_37 = arith.constant 0 : index
      %c0_38 = arith.constant 0 : index
      %c0_39 = arith.constant 0 : index
      %46 = vector.load %arg7[%c0_36, %c0_37, %c0_38, %c0_39] : memref<1x1x16x32xf32, #tpu.memory_space<vmem>>, vector<1x1x16x32xf32>
      %47 = vector.shape_cast %46 : vector<1x1x16x32xf32> to vector<16x32xf32>
      %48 = vector.shape_cast %45 : vector<16x32xf32> to vector<1x1x16x32xf32>
      tpu.vector_store %arg7[%c0_36, %c0_37, %c0_38, %c0_39], %48 {strides = array<i32>} : memref<1x1x16x32xf32, #tpu.memory_space<vmem>>, vector<1x1x16x32xf32>,
    } else {
    }
    return
  }
  func.func @transform_0(%arg0: i32, %arg1: i32, %arg2: i32, %arg3: i32) -> (i32, i32, i32, i32) {
    %c0_i32 = arith.constant 0 : i32
    %c0_i32_0 = arith.constant 0 : i32
    return %arg0, %arg1, %arg2, %c0_i32 : i32, i32, i32, i32
  }
  func.func @transform_1(%arg0: i32, %arg1: i32, %arg2: i32, %arg3: i32) -> (i32, i32, i32, i32) {
    %c0_i32 = arith.constant 0 : i32
    %c0_i32_0 = arith.constant 0 : i32
    return %arg0, %arg1, %arg3, %c0_i32 : i32, i32, i32, i32
  }
  func.func @transform_2(%arg0: i32, %arg1: i32, %arg2: i32, %arg3: i32) -> (i32, i32, i32, i32) {
    %c0_i32 = arith.constant 0 : i32
    %c0_i32_0 = arith.constant 0 : i32
    return %arg0, %arg1, %arg3, %c0_i32 : i32, i32, i32, i32
  }
  func.func @transform_3(%arg0: i32, %arg1: i32, %arg2: i32, %arg3: i32) -> (i32, i32, i32, i32) {
    %c0_i32 = arith.constant 0 : i32
    %c0_i32_0 = arith.constant 0 : i32
    return %arg0, %arg1, %arg2, %c0_i32 : i32, i32, i32, i32
  }
}

</mosaic_0001>

<llo_original>
// kernel: tpu_custom_call.1
$region0: #{tpu_custom_call.1}
  #allocation0 [shape = 'u32[]', space=smem, size = 0x4, offset = 0x4, fixed_abs, tag = 'smem constant byte address 0x4 - core index']
  #allocation1 [shape = 'u32[72,128]{1,0:T(1,128)}', space=vmem, size = 0x9000, scoped, tag = 'internal scratch']
  #allocation2 [shape = 'f32[16,1]{1,0:T(8,128)}', space=vmem, size = 0x2000, scoped, tag = 'scratch operand']
  #allocation3 [shape = 'f32[16,1]{1,0:T(8,128)}', space=vmem, size = 0x2000, scoped, tag = 'scratch operand']
  #allocation4 [shape = 'f32[16,32]{1,0:T(8,128)}', space=vmem, size = 0x2000, scoped, tag = 'scratch operand']
  %s0 = inlined_call_operand.hbm [shape: f32[2,2,16,32], index: 0, kind: input, shape index: {}]
  %s1 = inlined_call_operand.hbm [shape: f32[2,2,32,32], index: 1, kind: input, shape index: {}]
  %s2 = inlined_call_operand.hbm [shape: f32[2,2,32,32], index: 2, kind: input, shape index: {}]
  %s3 = inlined_call_operand.hbm [shape: f32[2,2,16,32], index: 3, kind: output, shape index: {}]
  %s4 = sld [smem:[#allocation0]]
  $region65: #{tpu_custom_call.1} parent=0
    _
  %s6 = ssub.s32 1, %s4
  %s7 = scalar_select 0, %s6, %s4
  $region1: #{tpu_custom_call.1} parent=0
    #allocation5 [shape = 'u8[16384]{0}', space=vmem, size = 0x4000, scoped, tag = 'input window, operand 0']
    #allocation6 [shape = 's32[2]{0}', space=sflag, size = 0x8, scoped, tag = 'scoped memory for tpu_custom_call.1']
    #allocation7 [shape = 's32[2]{0}', space=sflag, size = 0x8, scoped, tag = 'scoped memory for tpu_custom_call.1']
    #allocation8 [shape = 'u8[32768]{0}', space=vmem, size = 0x8000, scoped, tag = 'input window, operand 1']
    #allocation9 [shape = 's32[2]{0}', space=sflag, size = 0x8, scoped, tag = 'scoped memory for tpu_custom_call.1']
    #allocation10 [shape = 'u8[32768]{0}', space=vmem, size = 0x8000, scoped, tag = 'input window, operand 2']
    #allocation11 [shape = 'u8[16384]{0}', space=vmem, size = 0x4000, scoped, tag = 'output window, operand 0']
    %8 = vsyncpa [#allocation6], 0
    %s9 = scalar_lea.sflag [#allocation6], 1
    %10 = vsyncpa %s9, 0
    %11 = vsyncpa [#allocation9], 0
    %s12 = scalar_lea.sflag [#allocation9], 1
    %13 = vsyncpa %s12, 0
    %14 = vsyncpa [#allocation7], 0
    %s15 = scalar_lea.sflag [#allocation7], 1
    %16 = vsyncpa %s15, 0
    loop: start=0, step=1, limit=6
    $region2: #{tpu_custom_call.1} parent=1 // loop_pre_header
      _
    $region3: #{tpu_custom_call.1} parent=1 // loop_header
      %s18 = sphi 0, %s22
      %p19 = scmp.ge.s32.totalorder %s18, 6
      %s25 = sphi 0, %s51
      %s26 = sphi 0, %s47
      %s27 = sphi 0, %s43
      %s28 = sphi 0, %s39
      %s29 = sphi 0, %s25
      %s30 = sphi 0, %s26
      %s31 = sphi 0, %s27
      %s32 = sphi 0, %s28
      %s33 = sphi 0, %s29
      %s34 = sphi 0, %s30
      %s35 = sphi 0, %s31
      %s36 = sphi 0, %s32
      %s58 = sphi 0, %s60
      %s61 = sphi 0, %s58
      %s62 = sphi 0, %s61
      %s78 = sphi 0, %s62
      %s88 = sphi 0, %s90
      %s91 = sphi 0, %s88
      %s92 = sphi 0, %s91
      %s108 = sphi 0, %s92
      %s118 = sphi 0, %s120
      %s121 = sphi 0, %s118
      %s122 = sphi 0, %s121
      %s138 = sphi 0, %s122
      %s148 = sphi 0, %s150
      %s151 = sphi 0, %s148
      %s152 = sphi 0, %s151
      %s168 = sphi 0, %s152
    $region4: #{tpu_custom_call.1} parent=1 // loop_header_branch
      %21 = sbr.rel (%p19) target = $region8
    $region5: #{tpu_custom_call.1} parent=1 // loop_body
      %s23 = ssub.s32 %s18, 1
      %s24 = ssub.s32 %s18, 2
      %s37 = sadd.s32 1, %s28
      %p38 = scmp.ge.s32.totalorder %s37, 1
      %s39 = scalar_select %p38, 0, %s37
      %s40 = sadd.s32 1, %s27
      %s41 = scalar_select %p38, %s40, %s27
      %p42 = scmp.ge.s32.totalorder %s41, 1
      %s43 = scalar_select %p42, 0, %s41
      %s44 = sadd.s32 1, %s26
      %s45 = scalar_select %p42, %s44, %s26
      %p46 = scmp.ge.s32.totalorder %s45, 2
      %s47 = scalar_select %p46, 0, %s45
      %s48 = sadd.s32 1, %s25
      %s49 = scalar_select %p46, %s48, %s25
      %p50 = scmp.ge.s32.totalorder %s49, 2
      %s51 = scalar_select %p50, 0, %s49
      %s52 = ssub.s32 %s25, %s51
      %s53 = ssub.s32 %s26, %s47
      %s54 = sor.u32 %s52, %s53
      %s55 = ssub.s32 %s27, %s43
      %s56 = sor.u32 %s54, %s55
      %p57 = scmp.eq.s32.totalorder %s56, 0
      %s59 = sadd.s32 %s58, 1
      %s60 = scalar_select %p57, %s58, %s59
      %p63 = pneg %p57
      %p64 = scmp.eq.s32.totalorder %s18, 3
      %p65 = por %p63, %p64
      %p66 = scmp.ne.s32.totalorder %s58, %s61
      %p67 = scmp.eq.s32.totalorder %s18, 0
      %p68 = por %p66, %p67
      %p69 = scmp.ne.s32.totalorder %s58, %s61
      %p70 = scmp.eq.s32.totalorder %s23, 3
      %p71 = por %p69, %p70
      %p72 = scmp.ne.s32.totalorder %s61, %s62
      %p73 = scmp.eq.s32.totalorder %s23, 0
      %p74 = por %p72, %p73
      %p75 = scmp.ne.s32.totalorder %s61, %s62
      %p76 = scmp.eq.s32.totalorder %s24, 3
      %p77 = por %p75, %p76
      %p79 = scmp.ne.s32.totalorder %s62, %s78
      %p80 = scmp.eq.s32.totalorder %s24, 0
      %p81 = por %p79, %p80
      %s82 = ssub.s32 %s25, %s51
      %s83 = ssub.s32 %s26, %s47
      %s84 = sor.u32 %s82, %s83
      %s85 = ssub.s32 %s28, %s39
      %s86 = sor.u32 %s84, %s85
      %p87 = scmp.eq.s32.totalorder %s86, 0
      %s89 = sadd.s32 %s88, 1
      %s90 = scalar_select %p87, %s88, %s89
      %p93 = pneg %p87
      %p94 = scmp.eq.s32.totalorder %s18, 3
      %p95 = por %p93, %p94
      %p96 = scmp.ne.s32.totalorder %s88, %s91
      %p97 = scmp.eq.s32.totalorder %s18, 0
      %p98 = por %p96, %p97
      %p99 = scmp.ne.s32.totalorder %s88, %s91
      %p100 = scmp.eq.s32.totalorder %s23, 3
      %p101 = por %p99, %p100
      %p102 = scmp.ne.s32.totalorder %s91, %s92
      %p103 = scmp.eq.s32.totalorder %s23, 0
      %p104 = por %p102, %p103
      %p105 = scmp.ne.s32.totalorder %s91, %s92
      %p106 = scmp.eq.s32.totalorder %s24, 3
      %p107 = por %p105, %p106
      %p109 = scmp.ne.s32.totalorder %s92, %s108
      %p110 = scmp.eq.s32.totalorder %s24, 0
      %p111 = por %p109, %p110
      %s112 = ssub.s32 %s25, %s51
      %s113 = ssub.s32 %s26, %s47
      %s114 = sor.u32 %s112, %s113
      %s115 = ssub.s32 %s28, %s39
      %s116 = sor.u32 %s114, %s115
      %p117 = scmp.eq.s32.totalorder %s116, 0
      %s119 = sadd.s32 %s118, 1
      %s120 = scalar_select %p117, %s118, %s119
      %p123 = pneg %p117
      %p124 = scmp.eq.s32.totalorder %s18, 3
      %p125 = por %p123, %p124
      %p126 = scmp.ne.s32.totalorder %s118, %s121
      %p127 = scmp.eq.s32.totalorder %s18, 0
      %p128 = por %p126, %p127
      %p129 = scmp.ne.s32.totalorder %s118, %s121
      %p130 = scmp.eq.s32.totalorder %s23, 3
      %p131 = por %p129, %p130
      %p132 = scmp.ne.s32.totalorder %s121, %s122
      %p133 = scmp.eq.s32.totalorder %s23, 0
      %p134 = por %p132, %p133
      %p135 = scmp.ne.s32.totalorder %s121, %s122
      %p136 = scmp.eq.s32.totalorder %s24, 3
      %p137 = por %p135, %p136
      %p139 = scmp.ne.s32.totalorder %s122, %s138
      %p140 = scmp.eq.s32.totalorder %s24, 0
      %p141 = por %p139, %p140
      %s142 = ssub.s32 %s25, %s51
      %s143 = ssub.s32 %s26, %s47
      %s144 = sor.u32 %s142, %s143
      %s145 = ssub.s32 %s27, %s43
      %s146 = sor.u32 %s144, %s145
      %p147 = scmp.eq.s32.totalorder %s146, 0
      %s149 = sadd.s32 %s148, 1
      %s150 = scalar_select %p147, %s148, %s149
      %p153 = pneg %p147
      %p154 = scmp.eq.s32.totalorder %s18, 3
      %p155 = por %p153, %p154
      %p156 = scmp.ne.s32.totalorder %s148, %s151
      %p157 = scmp.eq.s32.totalorder %s18, 0
      %p158 = por %p156, %p157
      %p159 = scmp.ne.s32.totalorder %s148, %s151
      %p160 = scmp.eq.s32.totalorder %s23, 3
      %p161 = por %p159, %p160
      %p162 = scmp.ne.s32.totalorder %s151, %s152
      %p163 = scmp.eq.s32.totalorder %s23, 0
      %p164 = por %p162, %p163
      %p165 = scmp.ne.s32.totalorder %s151, %s152
      %p166 = scmp.eq.s32.totalorder %s24, 3
      %p167 = por %p165, %p166
      %p169 = scmp.ne.s32.totalorder %s152, %s168
      %p170 = scmp.eq.s32.totalorder %s24, 0
      %p171 = por %p169, %p170
      %p172 = scmp.le.s32.totalorder 1, %s18
      %p173 = scmp.lt.s32.totalorder %s18, 5
      %p174 = pnand %p172, %p173
      %p175 = pneg %p174
      // Predicated region
      $region9: #{tpu_custom_call.1} parent=5 // pred_check
        _
      $region10: #{tpu_custom_call.1} parent=5 // pred_check_branch
        %177 = sbr.rel (%p174) target = $region12
      $region11: #{tpu_custom_call.1} parent=5 // pred_region
        %s178 = ssub.s32 %s18, 1
      $region12: #{tpu_custom_call.1} parent=5 // pred_fallthru
        _
      %p179 = scmp.lt.s32.totalorder %s18, 4
      // Predicated region
      $region13: #{tpu_custom_call.1} parent=5 // pred_check
        %p180 = pneg %p179
      $region14: #{tpu_custom_call.1} parent=5 // pred_check_branch
        %182 = sbr.rel (%p180) target = $region16
      $region15: #{tpu_custom_call.1} parent=5 // pred_region
        // Predicated region
        $region17: #{tpu_custom_call.1} parent=15 // pred_check
          %p183 = pneg %p68
        $region18: #{tpu_custom_call.1} parent=15 // pred_check_branch
          %185 = sbr.rel (%p183) target = $region20
        $region19: #{tpu_custom_call.1} parent=15 // pred_region
          %s186 = sand.u32 %s58, 1
          %s187 = scalar_lea.sflag [#allocation6], %s186
          %s188 = sand.u32 %s58, 1
          %s189 = smul.addr %s188, 16
          %s190 = scalar_lea.vmem [#allocation5], %s189
          %s191 = smul.u32 2, %s27
          %193 = vsyncadd %s187, 0
          %s194 = smul.addr %s26, 2
          %s195 = sadd.s32 %s191, %s194
          %s196 = smul.addr %s25, 4
          %s197 = sadd.s32 %s195, %s196
          %s198 = smul.addr %s197, 8
          %s199 = scalar_lea.hbm %s0, %s198
          %s200 = sshll.u32 %s199, 4
          %s201 = int_to_ptr.hbm [resolvable:$true] %s200
          %s202 = sshll.u32 %s190, 4
          %s203 = int_to_ptr.vmem [resolvable:$true] %s202
          %208 = dma.hbm_to_vmem [thread:$0]  %s201, 256, %s203, %s187, 128, 128, 8
        $region20: #{tpu_custom_call.1} parent=15 // pred_fallthru
          _
        // Predicated region
        $region21: #{tpu_custom_call.1} parent=15 // pred_check
          %p209 = pneg %p98
        $region22: #{tpu_custom_call.1} parent=15 // pred_check_branch
          %211 = sbr.rel (%p209) target = $region24
        $region23: #{tpu_custom_call.1} parent=15 // pred_region
          %s212 = sand.u32 %s18, 1
          %s213 = scalar_lea.sflag [#allocation9], %s212
          %s214 = sand.u32 %s88, 1
          %s215 = smul.addr %s214, 32
          %s216 = scalar_lea.vmem [#allocation8], %s215
          %s217 = smul.u32 4, %s28
          %219 = vsyncadd %s213, 0
          %s220 = smul.addr %s26, 4
          %s221 = sadd.s32 %s217, %s220
          %s222 = smul.addr %s25, 8
          %s223 = sadd.s32 %s221, %s222
          %s224 = smul.addr %s223, 8
          %s225 = scalar_lea.hbm %s1, %s224
          %s226 = sshll.u32 %s225, 4
          %s227 = int_to_ptr.hbm [resolvable:$true] %s226
          %s228 = sshll.u32 %s216, 4
          %s229 = int_to_ptr.vmem [resolvable:$true] %s228
          %234 = dma.hbm_to_vmem [thread:$0]  %s227, 512, %s229, %s213, 128, 128, 8
        $region24: #{tpu_custom_call.1} parent=15 // pred_fallthru
          _
        // Predicated region
        $region25: #{tpu_custom_call.1} parent=15 // pred_check
          %p235 = pneg %p128
        $region26: #{tpu_custom_call.1} parent=15 // pred_check_branch
          %237 = sbr.rel (%p235) target = $region28
        $region27: #{tpu_custom_call.1} parent=15 // pred_region
          %s238 = sand.u32 %s18, 1
          %s239 = scalar_lea.sflag [#allocation9], %s238
          %s240 = sand.u32 %s118, 1
          %s241 = smul.addr %s240, 32
          %s242 = scalar_lea.vmem [#allocation10], %s241
          %s243 = smul.u32 4, %s28
          %245 = vsyncadd %s239, 0
          %s246 = smul.addr %s26, 4
          %s247 = sadd.s32 %s243, %s246
          %s248 = smul.addr %s25, 8
          %s249 = sadd.s32 %s247, %s248
          %s250 = smul.addr %s249, 8
          %s251 = scalar_lea.hbm %s2, %s250
          %s252 = sshll.u32 %s251, 4
          %s253 = int_to_ptr.hbm [resolvable:$true] %s252
          %s254 = sshll.u32 %s242, 4
          %s255 = int_to_ptr.vmem [resolvable:$true] %s254
          %260 = dma.hbm_to_vmem [thread:$0]  %s253, 512, %s255, %s239, 128, 128, 8
        $region28: #{tpu_custom_call.1} parent=15 // pred_fallthru
          _
      $region16: #{tpu_custom_call.1} parent=5 // pred_fallthru
        _
      %p261 = scmp.le.s32.totalorder 1, %s18
      %p262 = scmp.lt.s32.totalorder %s18, 5
      %p263 = pnand %p261, %p262
      %p264 = pneg %p263
      // Predicated region
      $region29: #{tpu_custom_call.1} parent=5 // pred_check
        _
      $region30: #{tpu_custom_call.1} parent=5 // pred_check_branch
        %266 = sbr.rel (%p263) target = $region32
      $region31: #{tpu_custom_call.1} parent=5 // pred_region
        %s267 = ssub.s32 %s18, 1
        %s268 = sand.u32 %s61, 1
        %s269 = scalar_lea.sflag [#allocation6], %s268
        %s270 = sand.u32 %s61, 1
        %s271 = smul.addr %s270, 16
        %s272 = scalar_lea.vmem [#allocation5], %s271
        // Predicated region
        $region33: #{tpu_custom_call.1} parent=31 // pred_check
          %p273 = pneg %p74
        $region34: #{tpu_custom_call.1} parent=31 // pred_check_branch
          %275 = sbr.rel (%p273) target = $region36
        $region35: #{tpu_custom_call.1} parent=31 // pred_region
          %277 = dma.done %s269, 256
        $region36: #{tpu_custom_call.1} parent=31 // pred_fallthru
          _
        %s278 = sand.u32 %s23, 1
        %s279 = scalar_lea.sflag [#allocation9], %s278
        %s280 = sand.u32 %s91, 1
        %s281 = smul.addr %s280, 32
        %s282 = scalar_lea.vmem [#allocation8], %s281
        // Predicated region
        $region37: #{tpu_custom_call.1} parent=31 // pred_check
          %p283 = pneg %p104
        $region38: #{tpu_custom_call.1} parent=31 // pred_check_branch
          %285 = sbr.rel (%p283) target = $region40
        $region39: #{tpu_custom_call.1} parent=31 // pred_region
          %287 = dma.done %s279, 512
        $region40: #{tpu_custom_call.1} parent=31 // pred_fallthru
          _
        %s288 = sand.u32 %s23, 1
        %s289 = scalar_lea.sflag [#allocation9], %s288
        %s290 = sand.u32 %s121, 1
        %s291 = smul.addr %s290, 32
        %s292 = scalar_lea.vmem [#allocation10], %s291
        // Predicated region
        $region41: #{tpu_custom_call.1} parent=31 // pred_check
          %p293 = pneg %p134
        $region42: #{tpu_custom_call.1} parent=31 // pred_check_branch
          %295 = sbr.rel (%p293) target = $region44
        $region43: #{tpu_custom_call.1} parent=31 // pred_region
          %297 = dma.done %s289, 512
        $region44: #{tpu_custom_call.1} parent=31 // pred_fallthru
          _
        %s298 = sand.u32 %s61, 1
        %s299 = scalar_lea.sflag [#allocation6], %s298
        %s300 = sand.u32 %s61, 1
        %s301 = smul.addr %s300, 16
        %s302 = scalar_lea.vmem [#allocation5], %s301
        %p303 = pneg %p74
        %p304 = pneg %p71
        %s305 = sand.u32 %s23, 1
        %s306 = scalar_lea.sflag [#allocation9], %s305
        %s307 = sand.u32 %s91, 1
        %s308 = smul.addr %s307, 32
        %s309 = scalar_lea.vmem [#allocation8], %s308
        %p310 = pneg %p104
        %p311 = pneg %p101
        %s312 = sand.u32 %s23, 1
        %s313 = scalar_lea.sflag [#allocation9], %s312
        %s314 = sand.u32 %s121, 1
        %s315 = smul.addr %s314, 32
        %s316 = scalar_lea.vmem [#allocation10], %s315
        %p317 = pneg %p134
        %p318 = pneg %p131
        %p319 = pneg %p164
        %p320 = pneg %p161
        %s321 = sand.u32 %s151, 1
        %s322 = scalar_lea.sflag [#allocation7], %s321
        %s323 = sand.u32 %s151, 1
        %s324 = smul.addr %s323, 16
        %s325 = scalar_lea.vmem [#allocation11], %s324
        %s326 = smul.u32 2, %s31
        %s327 = smul.u32 4, %s32
        %s328 = smul.u32 4, %s32
        %s329 = smul.u32 2, %s31
        %p330 = scmp.eq.s32.totalorder %s32, 0
        // Predicated region
        $region45: #{tpu_custom_call.1} parent=31 // pred_check
          %p331 = pneg %p330
        $region46: #{tpu_custom_call.1} parent=31 // pred_check_branch
          %333 = sbr.rel (%p331) target = $region48
        $region47: #{tpu_custom_call.1} parent=31 // pred_region
          %vm334 = vcmask 7168
          %335 = vst.msk [vmem:[#allocation2] sm:$0xff] %vm334, -inf
          %336 = vst.msk [vmem:[#allocation2 + $0x8] sm:$0xff] %vm334, -inf
          %337 = vst.msk [vmem:[#allocation3] sm:$0xff] %vm334, 0.0
          %338 = vst.msk [vmem:[#allocation3 + $0x8] sm:$0xff] %vm334, 0.0
          %vm339 = vcmask 261120
          %340 = vst.msk [vmem:[#allocation4] sm:$0xff] %vm339, 0.0
          %341 = vst.msk [vmem:[#allocation4 + $0x8] sm:$0xff] %vm339, 0.0
        $region48: #{tpu_custom_call.1} parent=31 // pred_fallthru
          _
        %v342 = vld [vmem:[%s272] sm:$0xff]
        %v343 = vld [vmem:[%s272 + $0x8] sm:$0xff]
        %v344 = vmul.f32 %v342, 0.25503486
        %v345 = vmul.f32 %v343, 0.25503486
        %v346 = vld [vmem:[%s282] sm:$0xff]
        %v347 = vld [vmem:[%s282 + $0x8] sm:$0xff]
        %v348 = vld [vmem:[%s282 + $0x10] sm:$0xff]
        %v349 = vld [vmem:[%s282 + $0x18] sm:$0xff]
        %v350 = vld [vmem:[%s292] sm:$0xff]
        %v351 = vld [vmem:[%s292 + $0x8] sm:$0xff]
        %v352 = vld [vmem:[%s292 + $0x10] sm:$0xff]
        %v353 = vld [vmem:[%s292 + $0x18] sm:$0xff]
        %vm354 = vcmask 261120
        %v356 = vsel %vm354, %v344, 0
        %v359 = vsel %vm354, %v345, 0
        %v362 = vsel %vm354, %v346, 0
        %v365 = vsel %vm354, %v347, 0
        %v368 = vsel %vm354, %v348, 0
        %v371 = vsel %vm354, %v349, 0
        %373 = vmatpush.xpose.msra.mxu0 0.0
        %374 = vmatpush.xpose.msra.mxu0 0.0
        %375 = vmatpush.xpose.msra.mxu0 0.0
        %376 = vmatpush.xpose.msra.mxu0 0.0
        %377 = vmatpush.xpose.msra.mxu0 0.0
        %378 = vmatpush.xpose.msra.mxu0 0.0
        %379 = vmatpush.xpose.msra.mxu0 0.0
        %380 = vmatpush.xpose.msra.mxu0 0.0
        %381 = vmatpush.xpose.msra.mxu0 0.0
        %382 = vmatpush.xpose.msra.mxu0 0.0
        %383 = vmatpush.xpose.msra.mxu0 0.0
        %384 = vmatpush.xpose.msra.mxu0 0.0
        %385 = vmatpush.xpose.msra.mxu0 %v371
        %386 = vmatpush.xpose.msra.mxu0 %v368
        %387 = vmatpush.xpose.msra.mxu0 %v365
        %388 = vmatpush.xpose.msra.mxu0 %v362
        %389 = vmatmul.f32.gmra.mxu0 %v356
        %v390 = vpop.f32.mrf.mxu0
        %v391 = vadd.f32 0.0, %v390
        %392 = vmatmul.f32.gmra.mxu0 %v359
        %v393 = vpop.f32.mrf.mxu0
        %v394 = vadd.f32 0.0, %v393
        %395 = vdwg.mxu0
        %v396 = vld [vmem:[#allocation2] sm:$0xff]
        %v397 = vld [vmem:[#allocation2 + $0x8] sm:$0xff]
        %v398 = vsel %vm354, %v391, -inf
        %399 = vmax.xlane.f32.xlu0 %v398
        %v400 = vpop.xlane.xlu0 %399
        %v401 = vsel %vm354, %v394, -inf
        %402 = vmax.xlane.f32.xlu0 %v401
        %v403 = vpop.xlane.xlu0 %402
        %v404 = vmax.f32 %v396, %v400
        %v405 = vmax.f32 %v397, %v403
        %v406 = vsub.f32 %v396, %v404
        %v407 = vsub.f32 %v397, %v405
        %v408 = vpow.pop %v406
        %v409 = vpow.pop %v407
        %411 = vset.pattern.permute.xlu0 0
        %412 = vperm.xlu0 %411, %v404
        %v413 = vpop.permute.xlu0 %412
        %416 = vset.pattern.permute.xlu0 0
        %417 = vperm.xlu0 %416, %v405
        %v418 = vpop.permute.xlu0 %417
        %v420 = vsub.f32 %v391, %v413
        %v421 = vsub.f32 %v394, %v418
        %v422 = vpow.pop %v420
        %v423 = vpow.pop %v421
        %v424 = vld [vmem:[#allocation3] sm:$0xff]
        %v425 = vld [vmem:[#allocation3 + $0x8] sm:$0xff]
        %v426 = vmul.f32 %v408, %v424
        %v427 = vmul.f32 %v409, %v425
        %v428 = vsel %vm354, %v422, 0.0
        %429 = vadd.xlane.f32.xlu0 %v428
        %v430 = vpop.xlane.xlu0 %429
        %v431 = vsel %vm354, %v423, 0.0
        %432 = vadd.xlane.f32.xlu0 %v431
        %v433 = vpop.xlane.xlu0 %432
        %v434 = vadd.f32 %v426, %v430
        %v435 = vadd.f32 %v427, %v433
        %vm436 = vcmask 7168
        %437 = vst.msk [vmem:[#allocation3] sm:$0xff] %vm436, %v434
        %438 = vst.msk [vmem:[#allocation3 + $0x8] sm:$0xff] %vm436, %v435
        %v440 = vsel %vm354, %v422, 0
        %v443 = vsel %vm354, %v423, 0
        %445 = vmatpush.msra.mxu0 0.0
        %446 = vmatpush.msra.mxu0 0.0
        %447 = vmatpush.msra.mxu0 0.0
        %448 = vmatpush.msra.mxu0 0.0
        %449 = vmatpush.msra.mxu0 0.0
        %450 = vmatpush.msra.mxu0 0.0
        %451 = vmatpush.msra.mxu0 0.0
        %452 = vmatpush.msra.mxu0 0.0
        %453 = vmatpush.msra.mxu0 0.0
        %454 = vmatpush.msra.mxu0 0.0
        %455 = vmatpush.msra.mxu0 0.0
        %456 = vmatpush.msra.mxu0 0.0
        %457 = vmatpush.msra.mxu0 %v353
        %458 = vmatpush.msra.mxu0 %v352
        %459 = vmatpush.msra.mxu0 %v351
        %460 = vmatpush.msra.mxu0 %v350
        %461 = vmatmul.f32.gmra.mxu0 %v440
        %v462 = vpop.f32.mrf.mxu0
        %v463 = vadd.f32 0.0, %v462
        %464 = vmatmul.f32.gmra.mxu0 %v443
        %v465 = vpop.f32.mrf.mxu0
        %v466 = vadd.f32 0.0, %v465
        %467 = vdwg.mxu0
        %v468 = vld [vmem:[#allocation4] sm:$0xff]
        %v469 = vld [vmem:[#allocation4 + $0x8] sm:$0xff]
        %471 = vset.pattern.permute.xlu0 0
        %472 = vperm.xlu0 %471, %v408
        %v473 = vpop.permute.xlu0 %472
        %476 = vset.pattern.permute.xlu0 0
        %477 = vperm.xlu0 %476, %v409
        %v478 = vpop.permute.xlu0 %477
        %v480 = vmul.f32 %v473, %v468
        %v481 = vmul.f32 %v478, %v469
        %v482 = vadd.f32 %v480, %v463
        %v483 = vadd.f32 %v481, %v466
        %484 = vst.msk [vmem:[#allocation4] sm:$0xff] %vm354, %v482
        %485 = vst.msk [vmem:[#allocation4 + $0x8] sm:$0xff] %vm354, %v483
        %486 = vst.msk [vmem:[#allocation2] sm:$0xff] %vm436, %v404
        %487 = vst.msk [vmem:[#allocation2 + $0x8] sm:$0xff] %vm436, %v405
        // Predicated region
        $region49: #{tpu_custom_call.1} parent=31 // pred_check
          %p488 = pneg %p330
        $region50: #{tpu_custom_call.1} parent=31 // pred_check_branch
          %490 = sbr.rel (%p488) target = $region52
        $region51: #{tpu_custom_call.1} parent=31 // pred_region
          %v491 = vld [vmem:[#allocation3] sm:$0xff]
          %v492 = vld [vmem:[#allocation3 + $0x8] sm:$0xff]
          %vm493 = vcmp.eq.f32.partialorder %v491, 0.0
          %vm494 = vcmp.eq.f32.partialorder %v492, 0.0
          %v495 = vsel %vm493, 1.0, %v491
          %v496 = vsel %vm494, 1.0, %v492
          %v497 = vrcp.pop %v495
          %v498 = vrcp.pop %v496
          %v499 = vld [vmem:[#allocation4] sm:$0xff]
          %v500 = vld [vmem:[#allocation4 + $0x8] sm:$0xff]
          %502 = vset.pattern.permute.xlu0 0
          %503 = vperm.xlu0 %502, %v497
          %v504 = vpop.permute.xlu0 %503
          %507 = vset.pattern.permute.xlu0 0
          %508 = vperm.xlu0 %507, %v498
          %v509 = vpop.permute.xlu0 %508
          %v511 = vmul.f32 %v499, %v504
          %v512 = vmul.f32 %v500, %v509
          %513 = vst.msk [vmem:[%s325] sm:$0xff] %vm354, %v511
          %514 = vst.msk [vmem:[%s325 + $0x8] sm:$0xff] %vm354, %v512
        $region52: #{tpu_custom_call.1} parent=31 // pred_fallthru
          _
        %s515 = sand.u32 %s151, 1
        %s516 = scalar_lea.sflag [#allocation7], %s515
        %s517 = sand.u32 %s151, 1
        %s518 = smul.addr %s517, 16
        %s519 = scalar_lea.vmem [#allocation11], %s518
        // Predicated region
        $region53: #{tpu_custom_call.1} parent=31 // pred_check
          %p520 = pneg %p161
        $region54: #{tpu_custom_call.1} parent=31 // pred_check_branch
          %522 = sbr.rel (%p520) target = $region56
        $region55: #{tpu_custom_call.1} parent=31 // pred_region
          %s523 = smul.u32 2, %s31
          %525 = vsyncadd %s516, 0
          %s526 = smul.addr %s30, 2
          %s527 = sadd.s32 %s523, %s526
          %s528 = smul.addr %s29, 4
          %s529 = sadd.s32 %s527, %s528
          %s530 = smul.addr %s529, 8
          %s531 = scalar_lea.hbm %s3, %s530
          %s532 = sshll.u32 %s519, 4
          %s533 = int_to_ptr.vmem [resolvable:$true] %s532
          %s534 = sshll.u32 %s531, 4
          %s535 = int_to_ptr.hbm [resolvable:$true] %s534
          %540 = dma.vmem_to_hbm [thread:$0]  %s533, 256, %s535, %s516, 128, 128, 8
        $region56: #{tpu_custom_call.1} parent=31 // pred_fallthru
          _
      $region32: #{tpu_custom_call.1} parent=5 // pred_fallthru
        _
      %p541 = scmp.le.s32.totalorder 2, %s18
      // Predicated region
      $region57: #{tpu_custom_call.1} parent=5 // pred_check
        %p542 = pneg %p541
      $region58: #{tpu_custom_call.1} parent=5 // pred_check_branch
        %544 = sbr.rel (%p542) target = $region60
      $region59: #{tpu_custom_call.1} parent=5 // pred_region
        %s545 = ssub.s32 %s18, 2
        // Predicated region
        $region61: #{tpu_custom_call.1} parent=59 // pred_check
          %p546 = pneg %p167
        $region62: #{tpu_custom_call.1} parent=59 // pred_check_branch
          %548 = sbr.rel (%p546) target = $region64
        $region63: #{tpu_custom_call.1} parent=59 // pred_region
          %s549 = sand.u32 %s152, 1
          %s550 = scalar_lea.sflag [#allocation7], %s549
          %s551 = sand.u32 %s152, 1
          %s552 = smul.addr %s551, 16
          %s553 = scalar_lea.vmem [#allocation11], %s552
          %555 = dma.done %s550, 256
        $region64: #{tpu_custom_call.1} parent=59 // pred_fallthru
          _
      $region60: #{tpu_custom_call.1} parent=5 // pred_fallthru
        _
    $region6: #{tpu_custom_call.1} parent=1 // loop_footer
      %s22 = sadd.s32 1, %s18
    $region7: #{tpu_custom_call.1} parent=1 // loop_footer_branch
      %17 = sbr.rel target = $region3
    $region8: #{tpu_custom_call.1} parent=1 // loop_exit
      _
    %556 = vsyncpa [#allocation6], 1
    %s557 = scalar_lea.sflag [#allocation6], 1
    %558 = vsyncpa %s557, 1
    %559 = vsyncpa [#allocation9], 1
    %s560 = scalar_lea.sflag [#allocation9], 1
    %561 = vsyncpa %s560, 1
    %562 = vsyncpa [#allocation7], 1
    %s563 = scalar_lea.sflag [#allocation7], 1
    %564 = vsyncpa %s563, 1

</llo_original>
